<compile_context>
chip_gen: v6e
topology: v6e:2x2x1
jax: 0.10.0
libtpu: 0.0.40
codegen_flags: <defaults>
</compile_context>

<pallas_src>
import functools

import jax
import jax.numpy as jnp
from jax.experimental import pallas as pl
from jax.experimental.pallas import tpu as pltpu

EPS = 0.2  # label smoothing factor used by the module


def _loss_kernel(pred_ref, tgt_ref, out_ref, *, eps):
    """One grid step processes a (n_class, tile_n) column-tile.

    pred_ref: (C, tile_n) logits  -- classes on sublanes, rows on lanes
    tgt_ref:  (1, tile_n) int32   -- target class per row
    out_ref:  (1, tile_n) f32     -- per-row smoothed CE loss
    """
    x = pred_ref[...].astype(jnp.float32)                    # (C, T)
    t = tgt_ref[...]                                         # (1, T)
    n_class = x.shape[0]

    # log-sum-exp per row (sublane reductions; all 128 lanes live)
    m = jnp.max(x, axis=0, keepdims=True)                    # (1, T)
    z = x - m
    lse = jnp.log(jnp.sum(jnp.exp(z), axis=0, keepdims=True))
    a = m + lse                                              # logsumexp(x) per row

    # gather the target logit with a masked sublane sum, plus sum of all logits
    sum_x = jnp.sum(x, axis=0, keepdims=True)                # (1, T)
    classes = jax.lax.broadcasted_iota(jnp.int32, x.shape, 0)
    x_t = jnp.sum(jnp.where(classes == t, x, 0.0), axis=0, keepdims=True)

    # closed-form label-smoothed cross entropy per row
    w2 = jnp.float32(eps / (n_class - 1))
    w1 = jnp.float32(1.0 - eps) - w2
    out_ref[...] = w1 * (a - x_t) + w2 * (jnp.float32(n_class) * a - sum_x)


def get_loss_pallas(pred, target, trans_feat=None, smoothing=True, tile_n=2048):
    """JAX/Pallas equivalent of models/dgcnn_partseg.py::get_loss.forward.

    pred:   (N, n_class) float logits
    target: any int shape that flattens to (N,)
    trans_feat: unused (matches the PyTorch module)
    """
    if not smoothing:
        # TODO(synk): the non-smoothing branch of the original PyTorch code
        # references an undefined `gold`; only smoothing=True is implemented.
        raise NotImplementedError("only smoothing=True is supported")

    pred = jnp.asarray(pred)
    n, n_class = pred.shape
    target = jnp.asarray(target).reshape(1, -1).astype(jnp.int32)  # (1, N)
    assert target.shape[1] == n

    # Lane-dense layout: classes on sublanes, rows on the 128-lane axis.
    # (cast to f32 happens inside the kernel, so bf16 inputs keep HBM traffic low)
    pred_t = pred.T                                                # (C, N)

    # Tile along the row/lane axis; tile must be a multiple of 128.
    tile_n = max(128, min(int(tile_n), pl.cdiv(n, 128) * 128))
    tile_n = pl.cdiv(tile_n, 128) * 128
    n_pad = pl.cdiv(n, tile_n) * tile_n
    if n_pad != n:
        pred_t = jnp.pad(pred_t, ((0, 0), (0, n_pad - n)))
        target = jnp.pad(target, ((0, 0), (0, n_pad - n)))

    kernel = functools.partial(_loss_kernel, eps=EPS)

    per_row_loss = pl.pallas_call(
        kernel,
        out_shape=jax.ShapeDtypeStruct((1, n_pad), jnp.float32),
        grid_spec=pltpu.PrefetchScalarGridSpec(
            num_scalar_prefetch=0,
            grid=(n_pad // tile_n,),
            in_specs=[
                pl.BlockSpec((n_class, tile_n), lambda i: (0, i)),
                pl.BlockSpec((1, tile_n), lambda i: (0, i)),
            ],
            out_specs=pl.BlockSpec((1, tile_n), lambda i: (0, i)),
        ),
        compiler_params=pltpu.CompilerParams(
            dimension_semantics=("parallel",)),
    )(pred_t, target)

    # Padded rows are simply excluded from the mean (exact result).
    return jnp.sum(per_row_loss[0, :n]) / jnp.float32(n)


def _reference_loss(pred, target, eps=EPS):
    """Pure-JAX reference mirroring the PyTorch code."""
    n_class = pred.shape[1]
    target = target.reshape(-1)
    one_hot = jax.nn.one_hot(target, n_class, dtype=pred.dtype)
    one_hot = one_hot * (1.0 - eps) + (1.0 - one_hot) * eps / (n_class - 1)
    log_prb = jax.nn.log_softmax(pred, axis=1)
    return -(one_hot * log_prb).sum(axis=1).mean()


if __name__ == "__main__":
    key = jax.random.PRNGKey(0)
    k_pred, k_tgt = jax.random.split(key)

    # Small shapes consistent with the module: N = batch*points rows, C classes.
    batch, points, n_class = 2, 32, 16
    n = batch * points                                    # 64 rows
    pred = jax.random.normal(k_pred, (n, n_class), jnp.float32)
    target = jax.random.randint(k_tgt, (batch, points), 0, n_class, jnp.int32)
    trans_feat = jax.random.normal(key, (batch, 4, 4), jnp.float32)  # unused

    loss = get_loss_pallas(pred, target, trans_feat, smoothing=True)
    loss = jax.block_until_ready(loss)

    ref = _reference_loss(pred, target)
    assert jnp.allclose(loss, ref, rtol=1e-5, atol=1e-5), (loss, ref)

    print("KERNEL_OK")
</pallas_src>

<mosaic_0001>
module attributes {stable_mosaic.version = 11 : i64} {
  func.func @_loss_kernel(%arg0: i32, %arg1: memref<16x128xf32, #tpu.memory_space<vmem>>, %arg2: memref<1x128xi32, #tpu.memory_space<vmem>>, %arg3: memref<1x128xf32, #tpu.memory_space<vmem>>) attributes {dimension_semantics = [#tpu.dimension_semantics<parallel>], iteration_bounds = array<i64: 1>, scalar_prefetch = 0 : i64, scratch_operands = 0 : i64, tpu.core_type = #tpu.core_type<tc>, window_params = [{transform_indices = @transform_0, window_bounds = array<i64: 16, 128>}, {transform_indices = @transform_1, window_bounds = array<i64: 1, 128>}, {transform_indices = @transform_2, window_bounds = array<i64: 1, 128>}]} {
    %c0 = arith.constant 0 : index
    %c0_0 = arith.constant 0 : index
    %0 = vector.load %arg1[%c0, %c0_0] : memref<16x128xf32, #tpu.memory_space<vmem>>, vector<16x128xf32>
    %c0_1 = arith.constant 0 : index
    %c0_2 = arith.constant 0 : index
    %1 = vector.load %arg2[%c0_1, %c0_2] : memref<1x128xi32, #tpu.memory_space<vmem>>, vector<1x128xi32>
    %cst = arith.constant dense<0xFF800000> : vector<128xf32>
    %2 = vector.multi_reduction <maximumf>, %0, %cst [0] : vector<16x128xf32> to vector<128xf32>
    %3 = vector.shape_cast %2 : vector<128xf32> to vector<1x128xf32>
    %4 = vector.broadcast %3 : vector<1x128xf32> to vector<16x128xf32>
    %5 = arith.subf %0, %4 : vector<16x128xf32>
    %6 = math.exp %5 : vector<16x128xf32>
    %cst_3 = arith.constant dense<0.000000e+00> : vector<128xf32>
    %7 = vector.multi_reduction <add>, %6, %cst_3 [0] : vector<16x128xf32> to vector<128xf32>
    %8 = vector.shape_cast %7 : vector<128xf32> to vector<1x128xf32>
    %9 = math.log %8 : vector<1x128xf32>
    %10 = arith.addf %3, %9 : vector<1x128xf32>
    %cst_4 = arith.constant dense<0.000000e+00> : vector<128xf32>
    %11 = vector.multi_reduction <add>, %0, %cst_4 [0] : vector<16x128xf32> to vector<128xf32>
    %12 = vector.shape_cast %11 : vector<128xf32> to vector<1x128xf32>
    %13 = tpu.iota {dimensions = array<i32: 0>} : vector<16x128xi32>
    %14 = vector.broadcast %1 : vector<1x128xi32> to vector<16x128xi32>
    %15 = arith.cmpi eq, %13, %14 : vector<16x128xi32>
    %cst_5 = arith.constant 0.000000e+00 : f32
    %16 = vector.broadcast %cst_5 : f32 to vector<16x128xf32>
    %17 = arith.select %15, %0, %16 : vector<16x128xi1>, vector<16x128xf32>
    %cst_6 = arith.constant dense<0.000000e+00> : vector<128xf32>
    %18 = vector.multi_reduction <add>, %17, %cst_6 [0] : vector<16x128xf32> to vector<128xf32>
    %19 = vector.shape_cast %18 : vector<128xf32> to vector<1x128xf32>
    %cst_7 = arith.constant 8.000000e-01 : f32
    %cst_8 = arith.constant 0.0133333337 : f32
    %20 = arith.subf %cst_7, %cst_8 : f32
    %21 = arith.subf %10, %19 : vector<1x128xf32>
    %22 = vector.broadcast %20 : f32 to vector<1x128xf32>
    %23 = arith.mulf %22, %21 : vector<1x128xf32>
    %cst_9 = arith.constant 1.600000e+01 : f32
    %24 = vector.broadcast %cst_9 : f32 to vector<1x128xf32>
    %25 = arith.mulf %24, %10 : vector<1x128xf32>
    %26 = arith.subf %25, %12 : vector<1x128xf32>
    %cst_10 = arith.constant 0.0133333337 : f32
    %27 = vector.broadcast %cst_10 : f32 to vector<1x128xf32>
    %28 = arith.mulf %27, %26 : vector<1x128xf32>
    %29 = arith.addf %23, %28 : vector<1x128xf32>
    %c0_11 = arith.constant 0 : index
    %c0_12 = arith.constant 0 : index
    %30 = vector.load %arg3[%c0_11, %c0_12] : memref<1x128xf32, #tpu.memory_space<vmem>>, vector<1x128xf32>
    tpu.vector_store %arg3[%c0_11, %c0_12], %29 {strides = array<i32>} : memref<1x128xf32, #tpu.memory_space<vmem>>, vector<1x128xf32>,
    return
  }
  func.func @transform_0(%arg0: i32) -> (i32, i32) {
    %c0_i32 = arith.constant 0 : i32
    %c0_i32_0 = arith.constant 0 : i32
    return %c0_i32, %arg0 : i32, i32
  }
  func.func @transform_1(%arg0: i32) -> (i32, i32) {
    %c0_i32 = arith.constant 0 : i32
    %c0_i32_0 = arith.constant 0 : i32
    return %c0_i32, %arg0 : i32, i32
  }
  func.func @transform_2(%arg0: i32) -> (i32, i32) {
    %c0_i32 = arith.constant 0 : i32
    %c0_i32_0 = arith.constant 0 : i32
    return %c0_i32, %arg0 : i32, i32
  }
}

</mosaic_0001>

<llo_original>
// kernel: tpu_custom_call.1
$region0: #{tpu_custom_call.1}
  #allocation0 [shape = 'u32[]', space=smem, size = 0x4, offset = 0x4, fixed_abs, tag = 'smem constant byte address 0x4 - core index']
  #allocation1 [shape = 'u32[144,128]{1,0:T(1,128)}', space=vmem, size = 0x12000, scoped, tag = 'internal scratch']
  %s0 = inlined_call_operand.hbm [shape: f32[16,128], index: 0, kind: input, shape index: {}]
  %s1 = inlined_call_operand.vmem [shape: s32[1,128], index: 1, kind: input, shape index: {}]
  %s2 = inlined_call_operand.hbm [shape: f32[1,128], index: 2, kind: output, shape index: {}]
  %s3 = sld [smem:[#allocation0]]
  $region22: #{tpu_custom_call.1} parent=0
    _
  %s5 = ssub.s32 1, %s3
  %s6 = scalar_select 0, %s5, %s3
  $region1: #{tpu_custom_call.1} parent=0
    #allocation2 [shape = 'u8[8192]{0}', space=vmem, size = 0x2000, scoped, tag = 'input window, operand 0, single buffered']
    #allocation3 [shape = 's32[1]{0}', space=sflag, size = 0x4, scoped, tag = 'scoped memory for tpu_custom_call.1']
    #allocation4 [shape = 's32[1]{0}', space=sflag, size = 0x4, scoped, tag = 'scoped memory for tpu_custom_call.1']
    #allocation5 [shape = 'u8[512]{0}', space=vmem, size = 0x400, scoped, tag = 'output window, operand 0, single buffered']
    %7 = vsyncpa [#allocation3], 0
    %8 = vsyncpa [#allocation4], 0
    // Predicated region
    $region2: #{tpu_custom_call.1} parent=1 // pred_check
      _
    $region3: #{tpu_custom_call.1} parent=1 // pred_check_branch
      %10 = sbr.rel (0) target = $region5
    $region4: #{tpu_custom_call.1} parent=1 // pred_region
      %s12 = ssub.s32 256, 256
      %13 = vsyncadd [#allocation3], %s12
      %s14 = sshll.u32 [#allocation2], 4
      %s15 = int_to_ptr.vmem [resolvable:$true] %s14
      %20 = dma.hbm_to_vmem [thread:$0]  %s0, 256, %s15, [#allocation3], 128, 128, 8
    $region5: #{tpu_custom_call.1} parent=1 // pred_fallthru
      _
    // Predicated region
    $region6: #{tpu_custom_call.1} parent=1 // pred_check
      _
    $region7: #{tpu_custom_call.1} parent=1 // pred_check_branch
      %22 = sbr.rel (0) target = $region9
    $region8: #{tpu_custom_call.1} parent=1 // pred_region
      _
    $region9: #{tpu_custom_call.1} parent=1 // pred_fallthru
      _
    // Predicated region
    $region10: #{tpu_custom_call.1} parent=1 // pred_check
      _
    $region11: #{tpu_custom_call.1} parent=1 // pred_check_branch
      %24 = sbr.rel (0) target = $region13
    $region12: #{tpu_custom_call.1} parent=1 // pred_region
      %25 = dma.done [#allocation3], 256
    $region13: #{tpu_custom_call.1} parent=1 // pred_fallthru
      _
    %v26 = vld [vmem:[#allocation2] sm:$0xff]
    %v27 = vld [vmem:[#allocation2 + $0x8] sm:$0xff]
    %v28 = vld [vmem:[%s1] sm:$0x1]
    %v29 = vmax.f32 %v26, %v27
    %v30 = vrot.slane %v29, 4
    %v31 = vmax.f32 %v29, %v30
    %v32 = vrot.slane %v31, 2
    %v33 = vmax.f32 %v31, %v32
    %v34 = vrot.slane %v33, 1
    %v35 = vmax.f32 %v33, %v34
    %v36 = vsub.f32 %v26, %v35
    %v37 = vsub.f32 %v27, %v35
    %v38 = vmul.f32 %v36, 1.442695
    %v39 = vpow.pop %v38
    %v40 = vmul.f32 %v37, 1.442695
    %v41 = vpow.pop %v40
    %v42 = vadd.f32 %v39, %v41
    %v43 = vrot.slane %v42, 4
    %v44 = vadd.f32 %v42, %v43
    %v45 = vrot.slane %v44, 2
    %v46 = vadd.f32 %v44, %v45
    %v47 = vrot.slane %v46, 1
    %v48 = vadd.f32 %v46, %v47
    %v49 = vlog2.pop %v48
    %v50 = vmul.f32 %v49, 0.6931472
    %v51 = vadd.f32 %v35, %v50
    %v52 = vadd.f32 %v26, %v27
    %v53 = vrot.slane %v52, 4
    %v54 = vadd.f32 %v52, %v53
    %v55 = vrot.slane %v54, 2
    %v56 = vadd.f32 %v54, %v55
    %v57 = vrot.slane %v56, 1
    %v58 = vadd.f32 %v56, %v57
    %v59 = vlaneseq
    %v60 = vshrl.u32 %v59, 7
    %v61 = vadd.s32 %v60, 8
    %v62 = vlaneseq
    %v63 = vshrl.u32 %v62, 7
    %v64 = vsub.s32 0, %v63
    %v65 = vrot.slane %v28, %v64
    %vm66 = vcmp.eq.s32.totalorder %v60, %v65
    %vm67 = vcmp.eq.s32.totalorder %v61, %v65
    %v68 = vsel %vm66, %v26, 0.0
    %v69 = vsel %vm67, %v27, 0.0
    %v70 = vadd.f32 %v68, %v69
    %v71 = vrot.slane %v70, 4
    %v72 = vadd.f32 %v70, %v71
    %v73 = vrot.slane %v72, 2
    %v74 = vadd.f32 %v72, %v73
    %v75 = vrot.slane %v74, 1
    %v76 = vadd.f32 %v74, %v75
    %v77 = vsub.f32 %v51, %v76
    %v78 = vmul.f32 %v77, 0.7866667
    %v79 = vmul.f32 %v51, 16.0
    %v80 = vsub.f32 %v79, %v58
    %v81 = vmul.f32 %v80, 0.013333334
    %v82 = vadd.f32 %v78, %v81
    %83 = vst [vmem:[#allocation5] sm:$0x1] %v82
    // Predicated region
    $region14: #{tpu_custom_call.1} parent=1 // pred_check
      _
    $region15: #{tpu_custom_call.1} parent=1 // pred_check_branch
      %85 = sbr.rel (0) target = $region17
    $region16: #{tpu_custom_call.1} parent=1 // pred_region
      %s87 = ssub.s32 16, 16
      %88 = vsyncadd [#allocation4], %s87
      %s90 = sshll.u32 [#allocation5], 4
      %s91 = int_to_ptr.vmem [resolvable:$true] %s90
      %93 = dma.vmem_to_hbm [thread:$0]  %s91, 16, %s2, [#allocation4]
    $region17: #{tpu_custom_call.1} parent=1 // pred_fallthru
      _
    // Predicated region
    $region18: #{tpu_custom_call.1} parent=1 // pred_check
      _
    $region19: #{tpu_custom_call.1} parent=1 // pred_check_branch
      %95 = sbr.rel (0) target = $region21
    $region20: #{tpu_custom_call.1} parent=1 // pred_region
      %96 = dma.done [#allocation4], 16
    $region21: #{tpu_custom_call.1} parent=1 // pred_fallthru
      _
    %97 = vsyncpa [#allocation3], 1
    %98 = vsyncpa [#allocation4], 1

</llo_original>
